<compile_context>
chip_gen: v7x
topology: tpu7x:2x2x1
jax: 0.10.0
libtpu: 0.0.40
codegen_flags: <defaults>
</compile_context>

<pallas_src>
import functools

import numpy as np

import jax
import jax.numpy as jnp
from jax import lax
from jax.experimental import pallas as pl
from jax.experimental.pallas import tpu as pltpu


def _tv_kernel(x_ref, out_ref, *, height, width, block_rows, valid_rows_last,
               grid_steps):
    hw = height * width
    x = x_ref[...]                                 # (block_rows, H*W), native dtype

    # Partial final block: zero the garbage rows (avoids a host-side pad copy).
    if valid_rows_last != block_rows:
        rows = jnp.where(pl.program_id(0) == grid_steps - 1,
                         valid_rows_last, block_rows)
        sub = lax.broadcasted_iota(jnp.int32, x.shape, 0)
        x = jnp.where(sub < rows, x, jnp.zeros_like(x))

    # Cast before subtracting (v5e has no bf16 VALU; avoids double rounding).
    xf = x.astype(jnp.float32)

    lane = lax.broadcasted_iota(jnp.int32, (1, hw), 1)

    h_part = jnp.float32(0.0)
    w_part = jnp.float32(0.0)

    if height > 1:
        # jnp.roll semantics with positive shift: result[j] = x[(j + width) % hw]
        xh = pltpu.roll(x, shift=hw - width, axis=1).astype(jnp.float32)
        dh = xh - xf
        # Drop the wrap-around pairs (last row paired with first row).
        hmask = (lane < (height - 1) * width).astype(jnp.float32)
        h_part = jnp.sum(dh * dh * hmask)

    if width > 1:
        # result[j] = x[(j + 1) % hw]
        xw = pltpu.roll(x, shift=hw - 1, axis=1).astype(jnp.float32)
        dw = xw - xf
        # Drop pairs that cross a row boundary (last column of each row).
        wmask = (lane % width != (width - 1)).astype(jnp.float32)
        w_part = jnp.sum(dw * dw * wmask)

    # One lane-dense output block: sublane 0 = h partial, sublane 1 = w partial.
    sub8 = lax.broadcasted_iota(jnp.int32, out_ref.shape, 1)
    out_ref[...] = jnp.where(sub8 == 0, h_part,
                             jnp.where(sub8 == 1, w_part, jnp.float32(0.0)))


def tv_loss(x, tv_loss_weight=1.0):
    """x: (N, C, H, W) float array. Returns the scalar TV loss (float32)."""
    n, c, h, w = x.shape
    nc = n * c
    hw = h * w

    count_h = float(c * (h - 1) * w)
    count_w = float(c * h * (w - 1))
    weight = float(tv_loss_weight)

    if hw < 2:
        # Degenerate 1x1 images: no neighbour pairs (reference -> 0/0 as well).
        z = jnp.float32(0.0)
        return (weight * 2.0 * (z / count_h + z / count_w) / n).astype(jnp.float32)

    x2 = x.reshape(nc, hw)
    itemsize = np.dtype(x.dtype).itemsize
    slice_bytes = hw * itemsize

    # Per-generation VMEM budget (v5e/v6e: 128 MiB phys, v7x: 64 MiB phys).
    try:
        vmem_capacity = int(pltpu.get_tpu_info().vmem_capacity_bytes)
    except Exception:
        vmem_capacity = 64 * 1024 * 1024
    vmem_limit = int(min(100 * 1024 * 1024, (vmem_capacity * 3) // 4))
    target_block_bytes = max(2 * 1024 * 1024, vmem_limit // 8)

    b_max = int(max(1, min(nc, target_block_bytes // max(slice_bytes, 1))))

    g_target = 4                      # keep enough steps for pipelining / megacore
    if nc <= 8:
        b = nc                        # full leading dim is always a legal block
    else:
        b = min(b_max, nc)
        if nc >= g_target * 8:
            b = min(b, max(8, nc // g_target))
        b = max(8, (b // 8) * 8)      # sublane(8)-aligned block rows
        if b >= nc:
            b = nc
    g = -(-nc // b)
    valid_rows_last = nc - (g - 1) * b
    # TODO(synk): a single (H, W) slice larger than the VMEM block budget would
    # need H-tiling with a one-row halo; not implemented here.

    kernel = functools.partial(
        _tv_kernel, height=h, width=w, block_rows=b,
        valid_rows_last=valid_rows_last, grid_steps=g)

    cost = pl.CostEstimate(
        flops=8 * x.size,
        transcendentals=0,
        bytes_accessed=x.size * itemsize + g * 8 * 128 * 4,
    )

    parts = pl.pallas_call(
        kernel,
        out_shape=jax.ShapeDtypeStruct((g, 8, 128), jnp.float32),
        grid_spec=pltpu.PrefetchScalarGridSpec(
            num_scalar_prefetch=0,
            grid=(g,),
            in_specs=[pl.BlockSpec((b, hw), lambda i: (i, 0))],
            out_specs=pl.BlockSpec((1, 8, 128), lambda i: (i, 0, 0)),
        ),
        compiler_params=pltpu.CompilerParams(
            dimension_semantics=("parallel",),
            vmem_limit_bytes=vmem_limit,
        ),
        cost_estimate=cost,
    )(x2)

    h_tv = jnp.sum(parts[:, 0, 0])
    w_tv = jnp.sum(parts[:, 1, 0])
    return (weight * 2.0 * (h_tv / count_h + w_tv / count_w) / n).astype(jnp.float32)


def tv_loss_ref(x, tv_loss_weight=1.0):
    n, c, h, w = x.shape
    count_h = c * (h - 1) * w
    count_w = c * h * (w - 1)
    h_tv = jnp.sum(jnp.square(x[:, :, 1:, :] - x[:, :, : h - 1, :]))
    w_tv = jnp.sum(jnp.square(x[:, :, :, 1:] - x[:, :, :, : w - 1]))
    return tv_loss_weight * 2.0 * (h_tv / count_h + w_tv / count_w) / n


if __name__ == "__main__":
    key = jax.random.PRNGKey(0)
    x = jax.random.normal(key, (2, 4, 16, 16), dtype=jnp.float32)

    out = jax.block_until_ready(tv_loss(x, tv_loss_weight=1.0))
    ref = jax.block_until_ready(tv_loss_ref(x, tv_loss_weight=1.0))
    assert jnp.allclose(out, ref, rtol=1e-5, atol=1e-5), (out, ref)

    # TODO(synk): the PyTorch forward's debug print() calls are intentionally
    # omitted (they do not affect the returned value).
    print("KERNEL_OK")
</pallas_src>

<mosaic_0001>
module attributes {stable_mosaic.version = 11 : i64} {
  func.func @_tv_kernel(%arg0: i32, %arg1: memref<8x256xf32, #tpu.memory_space<vmem>>, %arg2: memref<1x8x128xf32, #tpu.memory_space<vmem>>) attributes {dimension_semantics = [#tpu.dimension_semantics<parallel>], iteration_bounds = array<i64: 1>, scalar_prefetch = 0 : i64, scratch_operands = 0 : i64, tpu.core_type = #tpu.core_type<tc>, window_params = [{transform_indices = @transform_0, window_bounds = array<i64: 8, 256>}, {transform_indices = @transform_1, window_bounds = array<i64: 1, 8, 128>}]} {
    %c0 = arith.constant 0 : index
    %c0_0 = arith.constant 0 : index
    %0 = vector.load %arg1[%c0, %c0_0] : memref<8x256xf32, #tpu.memory_space<vmem>>, vector<8x256xf32>
    %1 = tpu.iota {dimensions = array<i32: 1>} : vector<1x256xi32>
    %c240_i32 = arith.constant 240 : i32
    %2 = tpu.dynamic_rotate %0 by %c240_i32 dim 1 : vector<8x256xf32>, i32 -> vector<8x256xf32>
    %3 = arith.subf %2, %0 : vector<8x256xf32>
    %c240_i32_1 = arith.constant 240 : i32
    %4 = vector.broadcast %c240_i32_1 : i32 to vector<1x256xi32>
    %5 = arith.cmpi slt, %1, %4 : vector<1x256xi32>
    %6 = arith.extui %5 : vector<1x256xi1> to vector<1x256xi32>
    %7 = arith.sitofp %6 : vector<1x256xi32> to vector<1x256xf32>
    %8 = arith.mulf %3, %3 : vector<8x256xf32>
    %9 = vector.broadcast %7 : vector<1x256xf32> to vector<8x256xf32>
    %10 = arith.mulf %8, %9 : vector<8x256xf32>
    %11 = vector.shape_cast %10 : vector<8x256xf32> to vector<1x8x256xf32>
    %cst = arith.constant dense<0.000000e+00> : vector<1xf32>
    %12 = vector.multi_reduction <add>, %11, %cst [1, 2] : vector<1x8x256xf32> to vector<1xf32>
    %13 = vector.shape_cast %12 : vector<1xf32> to vector<1x1x1xf32>
    %14 = vector.extract %13[0, 0, 0] : f32 from vector<1x1x1xf32>
    %c255_i32 = arith.constant 255 : i32
    %15 = tpu.dynamic_rotate %0 by %c255_i32 dim 1 : vector<8x256xf32>, i32 -> vector<8x256xf32>
    %16 = arith.subf %15, %0 : vector<8x256xf32>
    %c16_i32 = arith.constant 16 : i32
    %c0_i32 = arith.constant 0 : i32
    %17 = arith.cmpi eq, %c16_i32, %c0_i32 : i32
    %c1_i32 = arith.constant 1 : i32
    %18 = arith.select %17, %c1_i32, %c16_i32 : i32
    %19 = vector.broadcast %18 : i32 to vector<1x256xi32>
    %20 = arith.remsi %1, %19 : vector<1x256xi32>
    %c0_i32_2 = arith.constant 0 : i32
    %21 = vector.broadcast %c0_i32_2 : i32 to vector<1x256xi32>
    %22 = arith.cmpi ne, %20, %21 : vector<1x256xi32>
    %c0_i32_3 = arith.constant 0 : i32
    %23 = vector.broadcast %c0_i32_3 : i32 to vector<1x256xi32>
    %24 = arith.cmpi slt, %20, %23 : vector<1x256xi32>
    %c0_i32_4 = arith.constant 0 : i32
    %25 = arith.cmpi slt, %18, %c0_i32_4 : i32
    %26 = vector.broadcast %25 : i1 to vector<1x256xi1>
    %27 = vector.broadcast %26 : vector<1x256xi1> to vector<1x256xi1>
    %28 = arith.xori %24, %27 : vector<1x256xi1>
    %29 = arith.andi %28, %22 : vector<1x256xi1>
    %30 = vector.broadcast %18 : i32 to vector<1x256xi32>
    %31 = arith.addi %20, %30 : vector<1x256xi32>
    %32 = arith.select %29, %31, %20 : vector<1x256xi1>, vector<1x256xi32>
    %c15_i32 = arith.constant 15 : i32
    %33 = vector.broadcast %c15_i32 : i32 to vector<1x256xi32>
    %34 = arith.cmpi ne, %32, %33 : vector<1x256xi32>
    %35 = arith.extui %34 : vector<1x256xi1> to vector<1x256xi32>
    %36 = arith.sitofp %35 : vector<1x256xi32> to vector<1x256xf32>
    %37 = arith.mulf %16, %16 : vector<8x256xf32>
    %38 = vector.broadcast %36 : vector<1x256xf32> to vector<8x256xf32>
    %39 = arith.mulf %37, %38 : vector<8x256xf32>
    %40 = vector.shape_cast %39 : vector<8x256xf32> to vector<1x8x256xf32>
    %cst_5 = arith.constant dense<0.000000e+00> : vector<1xf32>
    %41 = vector.multi_reduction <add>, %40, %cst_5 [1, 2] : vector<1x8x256xf32> to vector<1xf32>
    %42 = vector.shape_cast %41 : vector<1xf32> to vector<1x1x1xf32>
    %43 = vector.extract %42[0, 0, 0] : f32 from vector<1x1x1xf32>
    %44 = tpu.iota {dimensions = array<i32: 1>} : vector<1x8x128xi32>
    %c0_i32_6 = arith.constant 0 : i32
    %45 = vector.broadcast %c0_i32_6 : i32 to vector<1x8x128xi32>
    %46 = arith.cmpi eq, %44, %45 : vector<1x8x128xi32>
    %c1_i32_7 = arith.constant 1 : i32
    %47 = vector.broadcast %c1_i32_7 : i32 to vector<1x8x128xi32>
    %48 = arith.cmpi eq, %44, %47 : vector<1x8x128xi32>
    %cst_8 = arith.constant 0.000000e+00 : f32
    %49 = vector.broadcast %43 : f32 to vector<1x8x128xf32>
    %50 = vector.broadcast %cst_8 : f32 to vector<1x8x128xf32>
    %51 = arith.select %48, %49, %50 : vector<1x8x128xi1>, vector<1x8x128xf32>
    %52 = vector.broadcast %14 : f32 to vector<1x8x128xf32>
    %53 = arith.select %46, %52, %51 : vector<1x8x128xi1>, vector<1x8x128xf32>
    %c0_9 = arith.constant 0 : index
    %c0_10 = arith.constant 0 : index
    %c0_11 = arith.constant 0 : index
    %54 = vector.load %arg2[%c0_9, %c0_10, %c0_11] : memref<1x8x128xf32, #tpu.memory_space<vmem>>, vector<1x8x128xf32>
    tpu.vector_store %arg2[%c0_9, %c0_10, %c0_11], %53 {strides = array<i32>} : memref<1x8x128xf32, #tpu.memory_space<vmem>>, vector<1x8x128xf32>,
    return
  }
  func.func @transform_0(%arg0: i32) -> (i32, i32) {
    %c0_i32 = arith.constant 0 : i32
    %c0_i32_0 = arith.constant 0 : i32
    return %arg0, %c0_i32 : i32, i32
  }
  func.func @transform_1(%arg0: i32) -> (i32, i32, i32) {
    %c0_i32 = arith.constant 0 : i32
    %c0_i32_0 = arith.constant 0 : i32
    %c0_i32_1 = arith.constant 0 : i32
    return %arg0, %c0_i32, %c0_i32_0 : i32, i32, i32
  }
}

</mosaic_0001>

<llo_original>
// kernel: tpu_custom_call.1
$region0: #{tpu_custom_call.1}
  #allocation0 [shape = 'u32[]', space=smem, size = 0x4, offset = 0x4, fixed_abs, tag = 'smem constant byte address 0x4 - core index']
  #allocation1 [shape = 'u32[144,128]{1,0:T(1,128)}', space=vmem, size = 0x12000, scoped, tag = 'internal scratch']
  %s0 = inlined_call_operand.hbm [shape: f32[8,256], index: 0, kind: input, shape index: {}]
  %s1 = inlined_call_operand.hbm [shape: f32[1,8,128], index: 1, kind: output, shape index: {}]
  %s2 = sld [smem:[#allocation0]]
  $region18: #{tpu_custom_call.1} parent=0
    _
  %s4 = ssub.s32 1, %s2
  %s5 = scalar_select 0, %s4, %s2
  $region1: #{tpu_custom_call.1} parent=0
    #allocation2 [shape = 'u8[8192]{0}', space=vmem, size = 0x2000, scoped, tag = 'input window, operand 0, single buffered']
    #allocation3 [shape = 's32[1]{0}', space=sflag, size = 0x4, scoped, tag = 'scoped memory for tpu_custom_call.1']
    #allocation4 [shape = 's32[1]{0}', space=sflag, size = 0x4, scoped, tag = 'scoped memory for tpu_custom_call.1']
    #allocation5 [shape = 'u8[4096]{0}', space=vmem, size = 0x1000, scoped, tag = 'output window, operand 0, single buffered']
    %6 = vsyncpa [#allocation3], 0
    %7 = vsyncpa [#allocation4], 0
    // Predicated region
    $region2: #{tpu_custom_call.1} parent=1 // pred_check
      _
    $region3: #{tpu_custom_call.1} parent=1 // pred_check_branch
      %9 = sbr.rel (0) target = $region5
    $region4: #{tpu_custom_call.1} parent=1 // pred_region
      %s11 = ssub.s32 256, 256
      %12 = vsyncadd [#allocation3], %s11
      %s14 = sshll.u32 [#allocation2], 4
      %s15 = int_to_ptr.vmem [resolvable:$true] %s14
      %17 = dma.hbm_to_vmem [thread:$0]  %s0, 256, %s15, [#allocation3]
    $region5: #{tpu_custom_call.1} parent=1 // pred_fallthru
      _
    // Predicated region
    $region6: #{tpu_custom_call.1} parent=1 // pred_check
      _
    $region7: #{tpu_custom_call.1} parent=1 // pred_check_branch
      %19 = sbr.rel (0) target = $region9
    $region8: #{tpu_custom_call.1} parent=1 // pred_region
      %20 = dma.done [#allocation3], 256
    $region9: #{tpu_custom_call.1} parent=1 // pred_fallthru
      _
    %v21 = vld [vmem:[#allocation2] sm:$0xff]
    %v22 = vld [vmem:[#allocation2 + $0x8] sm:$0xff]
    %v23 = vlaneseq
    %v24 = vand.u32 %v23, 127
    %v25 = vadd.s32 %v24, 128
    %26 = vrot.lane.b32.xlu0 %v21, 112
    %v27 = vpop.permute.xlu0 %26
    %28 = vrot.lane.b32.xlu0 %v22, 112
    %v29 = vpop.permute.xlu0 %28
    %vm30 = vcmp.lt.s32.totalorder %v24, 112
    %v31 = vsel %vm30, %v27, %v29
    %v32 = vsel %vm30, %v29, %v27
    %v33 = vsub.f32 %v31, %v21
    %v34 = vsub.f32 %v32, %v22
    %vm35 = vcmp.lt.s32.totalorder %v24, 240
    %vm36 = vcmp.lt.s32.totalorder %v25, 240
    %v37 = vsel %vm35, 1, 0
    %v38 = vsel %vm36, 1, 0
    %v39 = vcvt.s32.f32 %v37
    %v40 = vcvt.s32.f32 %v38
    %v41 = vmul.f32 %v33, %v33
    %v42 = vmul.f32 %v34, %v34
    %v43 = vmul.f32 %v41, %v39
    %v44 = vmul.f32 %v42, %v40
    %v45 = vadd.f32 %v43, %v44
    %46 = vadd.xlane.f32.xlu0 %v45
    %v47 = vpop.xlane.xlu0 %46
    %v48 = vrot.slane %v47, 4
    %v49 = vadd.f32 %v47, %v48
    %v50 = vrot.slane %v49, 2
    %v51 = vadd.f32 %v49, %v50
    %v52 = vrot.slane %v51, 1
    %v53 = vadd.f32 %v51, %v52
    %s54 = vtos %v53
    %55 = vrot.lane.b32.xlu0 %v21, 127
    %v56 = vpop.permute.xlu0 %55
    %57 = vrot.lane.b32.xlu0 %v22, 127
    %v58 = vpop.permute.xlu0 %57
    %vm59 = vcmp.lt.s32.totalorder %v24, 127
    %v60 = vsel %vm59, %v56, %v58
    %v61 = vsel %vm59, %v58, %v56
    %v62 = vsub.f32 %v60, %v21
    %v63 = vsub.f32 %v61, %v22
    %vm64 = vcmp.lt.s32.totalorder %v24, 0
    %v65 = vsub.s32 0, %v24
    %v66 = vsel %vm64, %v65, %v24
    %v67 = vshrl.u32 %v66, 4
    %v68 = vand.u32 %v66, 15
    %v69 = vsub.s32 0, %v68
    %v70 = vsel %vm64, %v69, %v68
    %vm71 = vcmp.lt.s32.totalorder %v25, 0
    %v72 = vsub.s32 0, %v25
    %v73 = vsel %vm71, %v72, %v25
    %v74 = vshrl.u32 %v73, 4
    %v75 = vand.u32 %v73, 15
    %v76 = vsub.s32 0, %v75
    %v77 = vsel %vm71, %v76, %v75
    %vm78 = vcmp.ne.s32.totalorder %v70, 0
    %vm79 = vcmp.ne.s32.totalorder %v77, 0
    %vm80 = vcmp.lt.s32.totalorder %v70, 0
    %vm81 = vcmp.lt.s32.totalorder %v77, 0
    %vm82 = vmand %vm80, %vm78
    %vm83 = vmand %vm81, %vm79
    %v84 = vadd.s32 %v70, 16
    %v85 = vadd.s32 %v77, 16
    %v86 = vsel %vm82, %v84, %v70
    %v87 = vsel %vm83, %v85, %v77
    %vm88 = vcmp.ne.s32.totalorder %v86, 15
    %vm89 = vcmp.ne.s32.totalorder %v87, 15
    %v90 = vsel %vm88, 1, 0
    %v91 = vsel %vm89, 1, 0
    %v92 = vcvt.s32.f32 %v90
    %v93 = vcvt.s32.f32 %v91
    %v94 = vmul.f32 %v62, %v62
    %v95 = vmul.f32 %v63, %v63
    %v96 = vmul.f32 %v94, %v92
    %v97 = vmul.f32 %v95, %v93
    %v98 = vadd.f32 %v96, %v97
    %99 = vadd.xlane.f32.xlu0 %v98
    %v100 = vpop.xlane.xlu0 %99
    %v101 = vrot.slane %v100, 4
    %v102 = vadd.f32 %v100, %v101
    %v103 = vrot.slane %v102, 2
    %v104 = vadd.f32 %v102, %v103
    %v105 = vrot.slane %v104, 1
    %v106 = vadd.f32 %v104, %v105
    %s107 = vtos %v106
    %v108 = vlaneseq
    %v109 = vshrl.u32 %v108, 7
    %vm110 = vcmp.eq.s32.totalorder %v109, 0
    %vm111 = vcmp.eq.s32.totalorder %v109, 1
    %v112 = vstv %s107
    %v113 = vsel %vm111, %v112, 0.0
    %v114 = vstv %s54
    %v115 = vsel %vm110, %v114, %v113
    %116 = vst [vmem:[#allocation5] sm:$0xff] %v115
    // Predicated region
    $region10: #{tpu_custom_call.1} parent=1 // pred_check
      _
    $region11: #{tpu_custom_call.1} parent=1 // pred_check_branch
      %118 = sbr.rel (0) target = $region13
    $region12: #{tpu_custom_call.1} parent=1 // pred_region
      %s120 = ssub.s32 128, 128
      %121 = vsyncadd [#allocation4], %s120
      %s123 = sshll.u32 [#allocation5], 4
      %s124 = int_to_ptr.vmem [resolvable:$true] %s123
      %126 = dma.vmem_to_hbm [thread:$0]  %s124, 128, %s1, [#allocation4]
    $region13: #{tpu_custom_call.1} parent=1 // pred_fallthru
      _
    // Predicated region
    $region14: #{tpu_custom_call.1} parent=1 // pred_check
      _
    $region15: #{tpu_custom_call.1} parent=1 // pred_check_branch
      %128 = sbr.rel (0) target = $region17
    $region16: #{tpu_custom_call.1} parent=1 // pred_region
      %129 = dma.done [#allocation4], 128
    $region17: #{tpu_custom_call.1} parent=1 // pred_fallthru
      _
    %130 = vsyncpa [#allocation3], 1
    %131 = vsyncpa [#allocation4], 1

</llo_original>
